<compile_context>
chip_gen: v7x
topology: tpu7x:2x2x1
jax: 0.10.0
libtpu: 0.0.40
codegen_flags: <defaults>
</compile_context>

<pallas_src>
import jax
import jax.numpy as jnp
from jax.experimental import pallas as pl
from jax.experimental.pallas import tpu as pltpu

HIDDEN = 32    # hidden_size
OUTPUT = 64    # output_size (vocab)


def decode_kernel(tok_ref,                                   # scalar prefetch (SMEM)
                  emb_ref, wih_ref, whh_ref, bih_ref, bhh_ref,
                  wout_ref, bout_ref, h0_ref,                 # inputs (VMEM)
                  logp_ref, hout_ref):                        # outputs (VMEM)
    t = pl.program_id(0)

    # Initialize the carried hidden state from the provided h0 at step 0.
    @pl.when(t == 0)
    def _():
        hout_ref[...] = h0_ref[...]

    # In-kernel embedding gather: one-hot row-select on the MXU.
    vocab = emb_ref.shape[0]
    tok = tok_ref[t]
    onehot = (jax.lax.broadcasted_iota(jnp.int32, (1, vocab), 1) == tok
              ).astype(jnp.float32)
    emb = jnp.dot(onehot, emb_ref[...], preferred_element_type=jnp.float32)  # (1, H)

    x = jnp.maximum(emb, 0.0)          # F.relu
    h = hout_ref[...]                  # (1, H) hidden carried across grid steps

    # Gate-stacked GRU projections (gate order r, z, n as in PyTorch).
    def proj(g):
        gi = jnp.dot(x, wih_ref[g], preferred_element_type=jnp.float32) + bih_ref[g]
        gh = jnp.dot(h, whh_ref[g], preferred_element_type=jnp.float32) + bhh_ref[g]
        return gi, gh

    gi_r, gh_r = proj(0)
    gi_z, gh_z = proj(1)
    gi_n, gh_n = proj(2)

    r = jax.nn.sigmoid(gi_r + gh_r)
    z = jax.nn.sigmoid(gi_z + gh_z)
    n = jnp.tanh(gi_n + r * gh_n)
    h_new = (1.0 - z) * n + z * h      # (1, H)

    # Output projection + log-softmax over dim=1.
    logits = jnp.dot(h_new, wout_ref[...],
                     preferred_element_type=jnp.float32) + bout_ref[...]  # (1, O)
    m = jnp.max(logits, axis=1, keepdims=True)
    lse = jnp.log(jnp.sum(jnp.exp(logits - m), axis=1, keepdims=True)) + m

    logp_ref[...] = (logits - lse).reshape(logp_ref.shape)
    hout_ref[...] = h_new


def decoder_decode(tokens, hidden, params):
    """Fused decode of a token sequence.

    tokens: (T,) int32, hidden: (1,1,H) f32.
    Returns (log-probs (T, OUTPUT), final hidden (1,1,H)); step t matches
    DecoderRNN.forward(tokens[t], hidden_t).
    """
    T = int(tokens.shape[0])
    h0 = hidden.reshape(1, HIDDEN)

    grid_spec = pltpu.PrefetchScalarGridSpec(
        num_scalar_prefetch=1,          # tokens -> SMEM, passed to index_maps
        grid=(T,),
        in_specs=[
            # Constant index maps keep every weight resident in VMEM.
            pl.BlockSpec((OUTPUT, HIDDEN), lambda t, toks: (0, 0)),        # embedding
            pl.BlockSpec((3, HIDDEN, HIDDEN), lambda t, toks: (0, 0, 0)),  # w_ih
            pl.BlockSpec((3, HIDDEN, HIDDEN), lambda t, toks: (0, 0, 0)),  # w_hh
            pl.BlockSpec((3, 1, HIDDEN), lambda t, toks: (0, 0, 0)),       # b_ih
            pl.BlockSpec((3, 1, HIDDEN), lambda t, toks: (0, 0, 0)),       # b_hh
            pl.BlockSpec((HIDDEN, OUTPUT), lambda t, toks: (0, 0)),        # w_out
            pl.BlockSpec((1, OUTPUT), lambda t, toks: (0, 0)),             # b_out
            pl.BlockSpec((1, HIDDEN), lambda t, toks: (0, 0)),             # h0
        ],
        out_specs=(
            pl.BlockSpec((1, 1, OUTPUT), lambda t, toks: (t, 0, 0)),       # log-probs
            pl.BlockSpec((1, HIDDEN), lambda t, toks: (0, 0)),             # carried h
        ),
    )

    logp, h_final = pl.pallas_call(
        decode_kernel,
        grid_spec=grid_spec,
        out_shape=(jax.ShapeDtypeStruct((T, 1, OUTPUT), jnp.float32),
                   jax.ShapeDtypeStruct((1, HIDDEN), jnp.float32)),
        compiler_params=pltpu.CompilerParams(
            dimension_semantics=("arbitrary",)),   # sequential carry over time
    )(tokens.astype(jnp.int32), params["embedding"],
      params["w_ih"], params["w_hh"], params["b_ih"], params["b_hh"],
      params["w_out"], params["b_out"], h0)

    return logp.reshape(T, OUTPUT), h_final.reshape(1, 1, HIDDEN)


def decoder_forward(token, hidden, params):
    """Exact single-step equivalent of DecoderRNN.forward(input, hidden)."""
    tokens = jnp.asarray(token, jnp.int32).reshape((1,))
    logp, h_new = decoder_decode(tokens, hidden, params)
    return logp, h_new


def init_params(key):
    ks = jax.random.split(key, 7)
    scale = 1.0 / jnp.sqrt(jnp.float32(HIDDEN))
    u = lambda k, shape: jax.random.uniform(k, shape, jnp.float32, -scale, scale)
    return {
        # nn.Embedding(output_size, hidden_size)
        "embedding": jax.random.normal(ks[0], (OUTPUT, HIDDEN), jnp.float32),
        # nn.GRU(hidden, hidden): PyTorch weight_ih_l0 is (3H, H), gate order
        # [r|z|n]; stored gate-stacked & transposed: w_ih[g] = W_ih[gH:(g+1)H].T
        "w_ih": u(ks[1], (3, HIDDEN, HIDDEN)),
        "w_hh": u(ks[2], (3, HIDDEN, HIDDEN)),
        "b_ih": u(ks[3], (3, 1, HIDDEN)),
        "b_hh": u(ks[4], (3, 1, HIDDEN)),
        # nn.Linear(hidden, output_size): PyTorch weight is (O, H); stored transposed.
        "w_out": u(ks[5], (HIDDEN, OUTPUT)),
        "b_out": u(ks[6], (1, OUTPUT)),
    }


# ---------------- pure-JAX reference (same math) ----------------
def _reference_step(params, h, token):
    x = jnp.maximum(params["embedding"][token].reshape(1, HIDDEN), 0.0)

    def proj(v, w, b, g):
        return v @ w[g] + b[g]

    r = jax.nn.sigmoid(proj(x, params["w_ih"], params["b_ih"], 0)
                       + proj(h, params["w_hh"], params["b_hh"], 0))
    z = jax.nn.sigmoid(proj(x, params["w_ih"], params["b_ih"], 1)
                       + proj(h, params["w_hh"], params["b_hh"], 1))
    n = jnp.tanh(proj(x, params["w_ih"], params["b_ih"], 2)
                 + r * proj(h, params["w_hh"], params["b_hh"], 2))
    h_new = (1.0 - z) * n + z * h
    logits = h_new @ params["w_out"] + params["b_out"]
    return h_new, jax.nn.log_softmax(logits, axis=1)


def reference_decode(tokens, hidden, params):
    h = hidden.reshape(1, HIDDEN)
    outs = []
    for t in range(tokens.shape[0]):
        h, logp = _reference_step(params, h, tokens[t])
        outs.append(logp)
    return jnp.concatenate(outs, axis=0), h.reshape(1, 1, HIDDEN)


if __name__ == "__main__":
    key = jax.random.PRNGKey(0)
    params = init_params(key)

    T = 8
    tokens = jax.random.randint(jax.random.PRNGKey(1), (T,), 0, OUTPUT, jnp.int32)
    hidden = jnp.zeros((1, 1, HIDDEN), jnp.float32)   # initHidden()

    # Fused T-step decode (teacher-forced token sequence) in one pallas_call.
    logp_seq, h_final = jax.jit(decoder_decode)(tokens, hidden, params)
    jax.block_until_ready((logp_seq, h_final))

    ref_seq, ref_h = reference_decode(tokens, hidden, params)
    assert logp_seq.shape == (T, OUTPUT) and h_final.shape == (1, 1, HIDDEN)
    assert jnp.allclose(logp_seq, ref_seq, atol=1e-4, rtol=1e-4)
    assert jnp.allclose(h_final, ref_h, atol=1e-4, rtol=1e-4)

    # Single-step API identical to DecoderRNN.forward(input, hidden).
    logp1, h1 = decoder_forward(jnp.array(5, jnp.int32), hidden, params)
    jax.block_until_ready((logp1, h1))
    ref1, ref_h1 = reference_decode(jnp.array([5], jnp.int32), hidden, params)
    assert logp1.shape == (1, OUTPUT) and h1.shape == (1, 1, HIDDEN)
    assert jnp.allclose(logp1, ref1, atol=1e-4, rtol=1e-4)
    assert jnp.allclose(h1, ref_h1, atol=1e-4, rtol=1e-4)

    print("KERNEL_OK")
</pallas_src>

<mosaic_0001>
module attributes {stable_mosaic.version = 11 : i64} {
  func.func @decode_kernel(%arg0: i32, %arg1: memref<8xi32, #tpu.memory_space<smem>>, %arg2: memref<64x32xf32, #tpu.memory_space<vmem>>, %arg3: memref<3x32x32xf32, #tpu.memory_space<vmem>>, %arg4: memref<3x32x32xf32, #tpu.memory_space<vmem>>, %arg5: memref<3x1x32xf32, #tpu.memory_space<vmem>>, %arg6: memref<3x1x32xf32, #tpu.memory_space<vmem>>, %arg7: memref<32x64xf32, #tpu.memory_space<vmem>>, %arg8: memref<1x64xf32, #tpu.memory_space<vmem>>, %arg9: memref<1x32xf32, #tpu.memory_space<vmem>>, %arg10: memref<1x1x64xf32, #tpu.memory_space<vmem>>, %arg11: memref<1x32xf32, #tpu.memory_space<vmem>>) attributes {dimension_semantics = [#tpu.dimension_semantics<arbitrary>], iteration_bounds = array<i64: 8>, scalar_prefetch = 1 : i64, scratch_operands = 0 : i64, tpu.core_type = #tpu.core_type<tc>, window_params = [{pipeline_mode = #tpu.pipeline_mode<synchronous>, transform_indices = @transform_0, window_bounds = array<i64: 64, 32>}, {pipeline_mode = #tpu.pipeline_mode<synchronous>, transform_indices = @transform_1, window_bounds = array<i64: 3, 32, 32>}, {pipeline_mode = #tpu.pipeline_mode<synchronous>, transform_indices = @transform_2, window_bounds = array<i64: 3, 32, 32>}, {pipeline_mode = #tpu.pipeline_mode<synchronous>, transform_indices = @transform_3, window_bounds = array<i64: 3, 1, 32>}, {pipeline_mode = #tpu.pipeline_mode<synchronous>, transform_indices = @transform_4, window_bounds = array<i64: 3, 1, 32>}, {pipeline_mode = #tpu.pipeline_mode<synchronous>, transform_indices = @transform_5, window_bounds = array<i64: 32, 64>}, {pipeline_mode = #tpu.pipeline_mode<synchronous>, transform_indices = @transform_6, window_bounds = array<i64: 1, 64>}, {pipeline_mode = #tpu.pipeline_mode<synchronous>, transform_indices = @transform_7, window_bounds = array<i64: 1, 32>}, {transform_indices = @transform_8, window_bounds = array<i64: 1, 1, 64>}, {pipeline_mode = #tpu.pipeline_mode<synchronous>, transform_indices = @transform_9, window_bounds = array<i64: 1, 32>}]} {
    %c0_i32 = arith.constant 0 : i32
    %0 = arith.cmpi eq, %arg0, %c0_i32 : i32
    %1 = arith.extui %0 : i1 to i32
    %c0_i32_0 = arith.constant 0 : i32
    %2 = arith.cmpi ne, %1, %c0_i32_0 : i32
    scf.if %2 {
      %c0_60 = arith.constant 0 : index
      %c0_61 = arith.constant 0 : index
      %89 = vector.load %arg9[%c0_60, %c0_61] : memref<1x32xf32, #tpu.memory_space<vmem>>, vector<1x32xf32>
      %c0_62 = arith.constant 0 : index
      %c0_63 = arith.constant 0 : index
      %90 = vector.load %arg11[%c0_62, %c0_63] : memref<1x32xf32, #tpu.memory_space<vmem>>, vector<1x32xf32>
      tpu.vector_store %arg11[%c0_62, %c0_63], %89 {strides = array<i32>} : memref<1x32xf32, #tpu.memory_space<vmem>>, vector<1x32xf32>,
    } else {
    }
    %3 = arith.index_cast %arg0 : i32 to index
    %4 = memref.load %arg1[%3] : memref<8xi32, #tpu.memory_space<smem>>
    %5 = tpu.iota {dimensions = array<i32: 1>} : vector<1x64xi32>
    %6 = vector.broadcast %4 : i32 to vector<1x64xi32>
    %7 = arith.cmpi eq, %5, %6 : vector<1x64xi32>
    %8 = arith.extui %7 : vector<1x64xi1> to vector<1x64xi32>
    %9 = arith.sitofp %8 : vector<1x64xi32> to vector<1x64xf32>
    %c0 = arith.constant 0 : index
    %c0_1 = arith.constant 0 : index
    %10 = vector.load %arg2[%c0, %c0_1] : memref<64x32xf32, #tpu.memory_space<vmem>>, vector<64x32xf32>
    %cst = arith.constant dense<0.000000e+00> : vector<1x32xf32>
    %11 = tpu.matmul %9, %10, %cst {dimension_numbers = #tpu.dot_dimension_numbers<[1], [0], [0], [1], [0, 0, 1, 1], [], []>} : vector<1x64xf32>, vector<64x32xf32>, vector<1x32xf32> -> vector<1x32xf32>
    %cst_2 = arith.constant 0.000000e+00 : f32
    %12 = vector.broadcast %cst_2 : f32 to vector<1x32xf32>
    %13 = arith.maximumf %11, %12 : vector<1x32xf32>
    %c0_3 = arith.constant 0 : index
    %c0_4 = arith.constant 0 : index
    %14 = vector.load %arg11[%c0_3, %c0_4] : memref<1x32xf32, #tpu.memory_space<vmem>>, vector<1x32xf32>
    %c0_5 = arith.constant 0 : index
    %c0_6 = arith.constant 0 : index
    %c0_7 = arith.constant 0 : index
    %15 = vector.load %arg3[%c0_5, %c0_6, %c0_7] : memref<3x32x32xf32, #tpu.memory_space<vmem>>, vector<1x32x32xf32>
    %16 = vector.shape_cast %15 : vector<1x32x32xf32> to vector<32x32xf32>
    %cst_8 = arith.constant dense<0.000000e+00> : vector<1x32xf32>
    %17 = tpu.matmul %13, %16, %cst_8 {dimension_numbers = #tpu.dot_dimension_numbers<[1], [0], [0], [1], [0, 0, 1, 1], [], []>} : vector<1x32xf32>, vector<32x32xf32>, vector<1x32xf32> -> vector<1x32xf32>
    %c0_9 = arith.constant 0 : index
    %c0_10 = arith.constant 0 : index
    %c0_11 = arith.constant 0 : index
    %18 = vector.load %arg5[%c0_9, %c0_10, %c0_11] : memref<3x1x32xf32, #tpu.memory_space<vmem>>, vector<1x1x32xf32>
    %19 = vector.shape_cast %18 : vector<1x1x32xf32> to vector<1x32xf32>
    %20 = arith.addf %17, %19 : vector<1x32xf32>
    %c0_12 = arith.constant 0 : index
    %c0_13 = arith.constant 0 : index
    %c0_14 = arith.constant 0 : index
    %21 = vector.load %arg4[%c0_12, %c0_13, %c0_14] : memref<3x32x32xf32, #tpu.memory_space<vmem>>, vector<1x32x32xf32>
    %22 = vector.shape_cast %21 : vector<1x32x32xf32> to vector<32x32xf32>
    %cst_15 = arith.constant dense<0.000000e+00> : vector<1x32xf32>
    %23 = tpu.matmul %14, %22, %cst_15 {dimension_numbers = #tpu.dot_dimension_numbers<[1], [0], [0], [1], [0, 0, 1, 1], [], []>} : vector<1x32xf32>, vector<32x32xf32>, vector<1x32xf32> -> vector<1x32xf32>
    %c0_16 = arith.constant 0 : index
    %c0_17 = arith.constant 0 : index
    %c0_18 = arith.constant 0 : index
    %24 = vector.load %arg6[%c0_16, %c0_17, %c0_18] : memref<3x1x32xf32, #tpu.memory_space<vmem>>, vector<1x1x32xf32>
    %25 = vector.shape_cast %24 : vector<1x1x32xf32> to vector<1x32xf32>
    %26 = arith.addf %23, %25 : vector<1x32xf32>
    %c1 = arith.constant 1 : index
    %c0_19 = arith.constant 0 : index
    %c0_20 = arith.constant 0 : index
    %27 = vector.load %arg3[%c1, %c0_19, %c0_20] : memref<3x32x32xf32, #tpu.memory_space<vmem>>, vector<1x32x32xf32>
    %28 = vector.shape_cast %27 : vector<1x32x32xf32> to vector<32x32xf32>
    %cst_21 = arith.constant dense<0.000000e+00> : vector<1x32xf32>
    %29 = tpu.matmul %13, %28, %cst_21 {dimension_numbers = #tpu.dot_dimension_numbers<[1], [0], [0], [1], [0, 0, 1, 1], [], []>} : vector<1x32xf32>, vector<32x32xf32>, vector<1x32xf32> -> vector<1x32xf32>
    %c1_22 = arith.constant 1 : index
    %c0_23 = arith.constant 0 : index
    %c0_24 = arith.constant 0 : index
    %30 = vector.load %arg5[%c1_22, %c0_23, %c0_24] : memref<3x1x32xf32, #tpu.memory_space<vmem>>, vector<1x1x32xf32>
    %31 = vector.shape_cast %30 : vector<1x1x32xf32> to vector<1x32xf32>
    %32 = arith.addf %29, %31 : vector<1x32xf32>
    %c1_25 = arith.constant 1 : index
    %c0_26 = arith.constant 0 : index
    %c0_27 = arith.constant 0 : index
    %33 = vector.load %arg4[%c1_25, %c0_26, %c0_27] : memref<3x32x32xf32, #tpu.memory_space<vmem>>, vector<1x32x32xf32>
    %34 = vector.shape_cast %33 : vector<1x32x32xf32> to vector<32x32xf32>
    %cst_28 = arith.constant dense<0.000000e+00> : vector<1x32xf32>
    %35 = tpu.matmul %14, %34, %cst_28 {dimension_numbers = #tpu.dot_dimension_numbers<[1], [0], [0], [1], [0, 0, 1, 1], [], []>} : vector<1x32xf32>, vector<32x32xf32>, vector<1x32xf32> -> vector<1x32xf32>
    %c1_29 = arith.constant 1 : index
    %c0_30 = arith.constant 0 : index
    %c0_31 = arith.constant 0 : index
    %36 = vector.load %arg6[%c1_29, %c0_30, %c0_31] : memref<3x1x32xf32, #tpu.memory_space<vmem>>, vector<1x1x32xf32>
    %37 = vector.shape_cast %36 : vector<1x1x32xf32> to vector<1x32xf32>
    %38 = arith.addf %35, %37 : vector<1x32xf32>
    %c2 = arith.constant 2 : index
    %c0_32 = arith.constant 0 : index
    %c0_33 = arith.constant 0 : index
    %39 = vector.load %arg3[%c2, %c0_32, %c0_33] : memref<3x32x32xf32, #tpu.memory_space<vmem>>, vector<1x32x32xf32>
    %40 = vector.shape_cast %39 : vector<1x32x32xf32> to vector<32x32xf32>
    %cst_34 = arith.constant dense<0.000000e+00> : vector<1x32xf32>
    %41 = tpu.matmul %13, %40, %cst_34 {dimension_numbers = #tpu.dot_dimension_numbers<[1], [0], [0], [1], [0, 0, 1, 1], [], []>} : vector<1x32xf32>, vector<32x32xf32>, vector<1x32xf32> -> vector<1x32xf32>
    %c2_35 = arith.constant 2 : index
    %c0_36 = arith.constant 0 : index
    %c0_37 = arith.constant 0 : index
    %42 = vector.load %arg5[%c2_35, %c0_36, %c0_37] : memref<3x1x32xf32, #tpu.memory_space<vmem>>, vector<1x1x32xf32>
    %43 = vector.shape_cast %42 : vector<1x1x32xf32> to vector<1x32xf32>
    %44 = arith.addf %41, %43 : vector<1x32xf32>
    %c2_38 = arith.constant 2 : index
    %c0_39 = arith.constant 0 : index
    %c0_40 = arith.constant 0 : index
    %45 = vector.load %arg4[%c2_38, %c0_39, %c0_40] : memref<3x32x32xf32, #tpu.memory_space<vmem>>, vector<1x32x32xf32>
    %46 = vector.shape_cast %45 : vector<1x32x32xf32> to vector<32x32xf32>
    %cst_41 = arith.constant dense<0.000000e+00> : vector<1x32xf32>
    %47 = tpu.matmul %14, %46, %cst_41 {dimension_numbers = #tpu.dot_dimension_numbers<[1], [0], [0], [1], [0, 0, 1, 1], [], []>} : vector<1x32xf32>, vector<32x32xf32>, vector<1x32xf32> -> vector<1x32xf32>
    %c2_42 = arith.constant 2 : index
    %c0_43 = arith.constant 0 : index
    %c0_44 = arith.constant 0 : index
    %48 = vector.load %arg6[%c2_42, %c0_43, %c0_44] : memref<3x1x32xf32, #tpu.memory_space<vmem>>, vector<1x1x32xf32>
    %49 = vector.shape_cast %48 : vector<1x1x32xf32> to vector<1x32xf32>
    %50 = arith.addf %47, %49 : vector<1x32xf32>
    %51 = arith.addf %20, %26 : vector<1x32xf32>
    %52 = arith.negf %51 : vector<1x32xf32>
    %53 = math.exp %52 : vector<1x32xf32>
    %cst_45 = arith.constant 1.000000e+00 : f32
    %54 = vector.broadcast %cst_45 : f32 to vector<1x32xf32>
    %55 = arith.addf %54, %53 : vector<1x32xf32>
    %56 = arith.divf %54, %55 : vector<1x32xf32>
    %57 = arith.addf %32, %38 : vector<1x32xf32>
    %58 = arith.negf %57 : vector<1x32xf32>
    %59 = math.exp %58 : vector<1x32xf32>
    %cst_46 = arith.constant 1.000000e+00 : f32
    %60 = vector.broadcast %cst_46 : f32 to vector<1x32xf32>
    %61 = arith.addf %60, %59 : vector<1x32xf32>
    %62 = arith.divf %60, %61 : vector<1x32xf32>
    %63 = arith.mulf %56, %50 : vector<1x32xf32>
    %64 = arith.addf %44, %63 : vector<1x32xf32>
    %65 = math.tanh %64 : vector<1x32xf32>
    %cst_47 = arith.constant 1.000000e+00 : f32
    %66 = vector.broadcast %cst_47 : f32 to vector<1x32xf32>
    %67 = arith.subf %66, %62 : vector<1x32xf32>
    %68 = arith.mulf %67, %65 : vector<1x32xf32>
    %69 = arith.mulf %62, %14 : vector<1x32xf32>
    %70 = arith.addf %68, %69 : vector<1x32xf32>
    %c0_48 = arith.constant 0 : index
    %c0_49 = arith.constant 0 : index
    %71 = vector.load %arg7[%c0_48, %c0_49] : memref<32x64xf32, #tpu.memory_space<vmem>>, vector<32x64xf32>
    %cst_50 = arith.constant dense<0.000000e+00> : vector<1x64xf32>
    %72 = tpu.matmul %70, %71, %cst_50 {dimension_numbers = #tpu.dot_dimension_numbers<[1], [0], [0], [1], [0, 0, 1, 1], [], []>} : vector<1x32xf32>, vector<32x64xf32>, vector<1x64xf32> -> vector<1x64xf32>
    %c0_51 = arith.constant 0 : index
    %c0_52 = arith.constant 0 : index
    %73 = vector.load %arg8[%c0_51, %c0_52] : memref<1x64xf32, #tpu.memory_space<vmem>>, vector<1x64xf32>
    %74 = arith.addf %72, %73 : vector<1x64xf32>
    %cst_53 = arith.constant dense<0xFF800000> : vector<1xf32>
    %75 = vector.multi_reduction <maximumf>, %74, %cst_53 [1] : vector<1x64xf32> to vector<1xf32>
    %76 = vector.shape_cast %75 : vector<1xf32> to vector<1x1xf32>
    %77 = vector.broadcast %76 : vector<1x1xf32> to vector<1x64xf32>
    %78 = arith.subf %74, %77 : vector<1x64xf32>
    %79 = math.exp %78 : vector<1x64xf32>
    %cst_54 = arith.constant dense<0.000000e+00> : vector<1xf32>
    %80 = vector.multi_reduction <add>, %79, %cst_54 [1] : vector<1x64xf32> to vector<1xf32>
    %81 = vector.shape_cast %80 : vector<1xf32> to vector<1x1xf32>
    %82 = math.log %81 : vector<1x1xf32>
    %83 = arith.addf %82, %76 : vector<1x1xf32>
    %84 = vector.broadcast %83 : vector<1x1xf32> to vector<1x64xf32>
    %85 = arith.subf %74, %84 : vector<1x64xf32>
    %86 = vector.shape_cast %85 : vector<1x64xf32> to vector<1x1x64xf32>
    %c0_55 = arith.constant 0 : index
    %c0_56 = arith.constant 0 : index
    %c0_57 = arith.constant 0 : index
    %87 = vector.load %arg10[%c0_55, %c0_56, %c0_57] : memref<1x1x64xf32, #tpu.memory_space<vmem>>, vector<1x1x64xf32>
    tpu.vector_store %arg10[%c0_55, %c0_56, %c0_57], %86 {strides = array<i32>} : memref<1x1x64xf32, #tpu.memory_space<vmem>>, vector<1x1x64xf32>,
    %c0_58 = arith.constant 0 : index
    %c0_59 = arith.constant 0 : index
    %88 = vector.load %arg11[%c0_58, %c0_59] : memref<1x32xf32, #tpu.memory_space<vmem>>, vector<1x32xf32>
    tpu.vector_store %arg11[%c0_58, %c0_59], %70 {strides = array<i32>} : memref<1x32xf32, #tpu.memory_space<vmem>>, vector<1x32xf32>,
    return
  }
  func.func @transform_0(%arg0: i32, %arg1: memref<8xi32, #tpu.memory_space<smem>>) -> (i32, i32) {
    %c0_i32 = arith.constant 0 : i32
    %c0_i32_0 = arith.constant 0 : i32
    %c0_i32_1 = arith.constant 0 : i32
    return %c0_i32, %c0_i32_0 : i32, i32
  }
  func.func @transform_1(%arg0: i32, %arg1: memref<8xi32, #tpu.memory_space<smem>>) -> (i32, i32, i32) {
    %c0_i32 = arith.constant 0 : i32
    %c0_i32_0 = arith.constant 0 : i32
    %c0_i32_1 = arith.constant 0 : i32
    %c0_i32_2 = arith.constant 0 : i32
    return %c0_i32, %c0_i32_0, %c0_i32_1 : i32, i32, i32
  }
  func.func @transform_2(%arg0: i32, %arg1: memref<8xi32, #tpu.memory_space<smem>>) -> (i32, i32, i32) {
    %c0_i32 = arith.constant 0 : i32
    %c0_i32_0 = arith.constant 0 : i32
    %c0_i32_1 = arith.constant 0 : i32
    %c0_i32_2 = arith.constant 0 : i32
    return %c0_i32, %c0_i32_0, %c0_i32_1 : i32, i32, i32
  }
  func.func @transform_3(%arg0: i32, %arg1: memref<8xi32, #tpu.memory_space<smem>>) -> (i32, i32, i32) {
    %c0_i32 = arith.constant 0 : i32
    %c0_i32_0 = arith.constant 0 : i32
    %c0_i32_1 = arith.constant 0 : i32
    %c0_i32_2 = arith.constant 0 : i32
    return %c0_i32, %c0_i32_0, %c0_i32_1 : i32, i32, i32
  }
  func.func @transform_4(%arg0: i32, %arg1: memref<8xi32, #tpu.memory_space<smem>>) -> (i32, i32, i32) {
    %c0_i32 = arith.constant 0 : i32
    %c0_i32_0 = arith.constant 0 : i32
    %c0_i32_1 = arith.constant 0 : i32
    %c0_i32_2 = arith.constant 0 : i32
    return %c0_i32, %c0_i32_0, %c0_i32_1 : i32, i32, i32
  }
  func.func @transform_5(%arg0: i32, %arg1: memref<8xi32, #tpu.memory_space<smem>>) -> (i32, i32) {
    %c0_i32 = arith.constant 0 : i32
    %c0_i32_0 = arith.constant 0 : i32
    %c0_i32_1 = arith.constant 0 : i32
    return %c0_i32, %c0_i32_0 : i32, i32
  }
  func.func @transform_6(%arg0: i32, %arg1: memref<8xi32, #tpu.memory_space<smem>>) -> (i32, i32) {
    %c0_i32 = arith.constant 0 : i32
    %c0_i32_0 = arith.constant 0 : i32
    %c0_i32_1 = arith.constant 0 : i32
    return %c0_i32, %c0_i32_0 : i32, i32
  }
  func.func @transform_7(%arg0: i32, %arg1: memref<8xi32, #tpu.memory_space<smem>>) -> (i32, i32) {
    %c0_i32 = arith.constant 0 : i32
    %c0_i32_0 = arith.constant 0 : i32
    %c0_i32_1 = arith.constant 0 : i32
    return %c0_i32, %c0_i32_0 : i32, i32
  }
  func.func @transform_8(%arg0: i32, %arg1: memref<8xi32, #tpu.memory_space<smem>>) -> (i32, i32, i32) {
    %c0_i32 = arith.constant 0 : i32
    %c0_i32_0 = arith.constant 0 : i32
    %c0_i32_1 = arith.constant 0 : i32
    return %arg0, %c0_i32, %c0_i32_0 : i32, i32, i32
  }
  func.func @transform_9(%arg0: i32, %arg1: memref<8xi32, #tpu.memory_space<smem>>) -> (i32, i32) {
    %c0_i32 = arith.constant 0 : i32
    %c0_i32_0 = arith.constant 0 : i32
    %c0_i32_1 = arith.constant 0 : i32
    return %c0_i32, %c0_i32_0 : i32, i32
  }
}

</mosaic_0001>

<llo_original>
// kernel: decoder_decode.1
$region0: #{decoder_decode.1}
  #allocation0 [shape = 'u32[]', space=smem, size = 0x4, offset = 0x4, fixed_abs, tag = 'smem constant byte address 0x4 - core index']
  #allocation1 [shape = 'u32[144,128]{1,0:T(1,128)}', space=vmem, size = 0x12000, scoped, tag = 'internal scratch']
  #allocation2 [shape = 's32[1]{0}', space=sflag, size = 0x4, scoped, tag = 'scoped memory for decoder_decode.1']
  #allocation3 [shape = 'u8[512]{0}', space=smem, size = 0x200, scoped, tag = 'prefetched SMEM operand 0']
  %s0 = inlined_call_operand.vmem [shape: s32[8], index: 0, kind: input, shape index: {}]
  %s1 = inlined_call_operand.vmem [shape: f32[64,32], index: 1, kind: input, shape index: {}]
  %s2 = inlined_call_operand.vmem [shape: f32[3,32,32], index: 2, kind: input, shape index: {}]
  %s3 = inlined_call_operand.hbm [shape: f32[3,32,32], index: 3, kind: input, shape index: {}]
  %s4 = inlined_call_operand.hbm [shape: f32[3,1,32], index: 4, kind: input, shape index: {}]
  %s5 = inlined_call_operand.hbm [shape: f32[3,1,32], index: 5, kind: input, shape index: {}]
  %s6 = inlined_call_operand.vmem [shape: f32[32,64], index: 6, kind: input, shape index: {}]
  %s7 = inlined_call_operand.vmem [shape: f32[1,64], index: 7, kind: input, shape index: {}]
  %s8 = inlined_call_operand.hbm [shape: f32[1,32], index: 8, kind: input, shape index: {}]
  %s9 = inlined_call_operand.hbm [shape: f32[8,1,64], index: 9, kind: output, shape index: {0}]
  %s10 = inlined_call_operand.hbm [shape: f32[1,32], index: 10, kind: output, shape index: {1}]
  %11 = xla_tuple %s9, %s10
  %s12 = sld [smem:[#allocation0]]
  $region93: #{decoder_decode.1} parent=0
    _
  %s14 = ssub.s32 1, %s12
  %s15 = scalar_select 0, %s14, %s12
  %s16 = sshll.u32 %s0, 4
  %s17 = int_to_ptr.vmem [resolvable:$true] %s16
  %19 = dma.vmem_to_smem %s17, 16, [#allocation3], [#allocation2]
  %20 = dma.done [#allocation2], 16
  %21 = sfence
  $region1: #{decoder_decode.1} parent=0
    #allocation4 [shape = 'u8[49152]{0}', space=vmem, size = 0xc000, scoped, tag = 'input window, operand 3, single buffered']
    #allocation5 [shape = 's32[2]{0}', space=sflag, size = 0x8, scoped, tag = 'scoped memory for decoder_decode.1']
    #allocation6 [shape = 's32[2]{0}', space=sflag, size = 0x8, scoped, tag = 'scoped memory for decoder_decode.1']
    #allocation7 [shape = 'u8[1536]{0}', space=vmem, size = 0x800, scoped, tag = 'input window, operand 4, single buffered']
    #allocation8 [shape = 's32[1]{0}', space=sflag, size = 0x4, scoped, tag = 'scoped memory for decoder_decode.1']
    #allocation9 [shape = 'u8[1536]{0}', space=vmem, size = 0x800, scoped, tag = 'input window, operand 5, single buffered']
    #allocation10 [shape = 'u8[512]{0}', space=vmem, size = 0x400, scoped, tag = 'input window, operand 8, single buffered']
    #allocation11 [shape = 's32[1]{0}', space=sflag, size = 0x4, scoped, tag = 'scoped memory for decoder_decode.1']
    #allocation12 [shape = 'u8[1024]{0}', space=vmem, size = 0x400, scoped, tag = 'output window, operand 0']
    #allocation13 [shape = 'u8[512]{0}', space=vmem, size = 0x400, scoped, tag = 'output window, operand 1, single buffered']
    #allocation14 [shape = 's32[1]{0}', space=sflag, size = 0x4, scoped, tag = 'scoped memory for decoder_decode.1']
    %22 = vsyncpa [#allocation5], 0
    %23 = vsyncpa [#allocation8], 0
    %24 = vsyncpa [#allocation11], 0
    %25 = vsyncpa [#allocation6], 0
    %s26 = scalar_lea.sflag [#allocation6], 1
    %27 = vsyncpa %s26, 0
    %28 = vsyncpa [#allocation14], 0
    loop: start=0, step=1, limit=10
    $region2: #{decoder_decode.1} parent=1 // loop_pre_header
      _
    $region3: #{decoder_decode.1} parent=1 // loop_header
      %s30 = sphi 0, %s34
      %p31 = scmp.ge.s32.totalorder %s30, 10
      %s38 = sphi 0, %s38
      %s40 = sphi 0, %s38
      %s41 = sphi 0, %s40
      %s55 = sphi 0, %s41
      %s59 = sphi 0, %s59
      %s61 = sphi 0, %s59
      %s62 = sphi 0, %s61
      %s76 = sphi 0, %s62
      %s80 = sphi 0, %s80
      %s82 = sphi 0, %s80
      %s83 = sphi 0, %s82
      %s97 = sphi 0, %s83
      %s101 = sphi 0, %s101
      %s103 = sphi 0, %s101
      %s104 = sphi 0, %s103
      %s118 = sphi 0, %s104
      %s122 = sphi 0, %s122
      %s124 = sphi 0, %s122
      %s125 = sphi 0, %s124
      %s139 = sphi 0, %s125
      %s143 = sphi 0, %s143
      %s145 = sphi 0, %s143
      %s146 = sphi 0, %s145
      %s160 = sphi 0, %s146
      %s164 = sphi 0, %s164
      %s166 = sphi 0, %s164
      %s167 = sphi 0, %s166
      %s181 = sphi 0, %s167
      %s185 = sphi 0, %s185
      %s187 = sphi 0, %s185
      %s188 = sphi 0, %s187
      %s202 = sphi 0, %s188
      %s208 = sphi 0, %s210
      %s211 = sphi 0, %s208
      %s212 = sphi 0, %s211
      %s228 = sphi 0, %s212
      %s232 = sphi 0, %s232
      %s234 = sphi 0, %s232
      %s235 = sphi 0, %s234
      %s249 = sphi 0, %s235
    $region4: #{decoder_decode.1} parent=1 // loop_header_branch
      %33 = sbr.rel (%p31) target = $region8
    $region5: #{decoder_decode.1} parent=1 // loop_body
      %s35 = ssub.s32 %s30, 1
      %s36 = ssub.s32 %s30, 2
      %s37 = sadd.s32 %s30, 1
      %s39 = sadd.s32 %s38, 1
      %p42 = scmp.eq.s32.totalorder %s30, 7
      %p43 = scmp.ne.s32.totalorder %s38, %s40
      %p44 = scmp.eq.s32.totalorder %s30, 0
      %p45 = por %p43, %p44
      %p46 = scmp.ne.s32.totalorder %s38, %s40
      %p47 = scmp.eq.s32.totalorder %s35, 7
      %p48 = por %p46, %p47
      %p49 = scmp.ne.s32.totalorder %s40, %s41
      %p50 = scmp.eq.s32.totalorder %s35, 0
      %p51 = por %p49, %p50
      %p52 = scmp.ne.s32.totalorder %s40, %s41
      %p53 = scmp.eq.s32.totalorder %s36, 7
      %p54 = por %p52, %p53
      %p56 = scmp.ne.s32.totalorder %s41, %s55
      %p57 = scmp.eq.s32.totalorder %s36, 0
      %p58 = por %p56, %p57
      %s60 = sadd.s32 %s59, 1
      %p63 = scmp.eq.s32.totalorder %s30, 7
      %p64 = scmp.ne.s32.totalorder %s59, %s61
      %p65 = scmp.eq.s32.totalorder %s30, 0
      %p66 = por %p64, %p65
      %p67 = scmp.ne.s32.totalorder %s59, %s61
      %p68 = scmp.eq.s32.totalorder %s35, 7
      %p69 = por %p67, %p68
      %p70 = scmp.ne.s32.totalorder %s61, %s62
      %p71 = scmp.eq.s32.totalorder %s35, 0
      %p72 = por %p70, %p71
      %p73 = scmp.ne.s32.totalorder %s61, %s62
      %p74 = scmp.eq.s32.totalorder %s36, 7
      %p75 = por %p73, %p74
      %p77 = scmp.ne.s32.totalorder %s62, %s76
      %p78 = scmp.eq.s32.totalorder %s36, 0
      %p79 = por %p77, %p78
      %s81 = sadd.s32 %s80, 1
      %p84 = scmp.eq.s32.totalorder %s30, 7
      %p85 = scmp.ne.s32.totalorder %s80, %s82
      %p86 = scmp.eq.s32.totalorder %s30, 0
      %p87 = por %p85, %p86
      %p88 = scmp.ne.s32.totalorder %s80, %s82
      %p89 = scmp.eq.s32.totalorder %s35, 7
      %p90 = por %p88, %p89
      %p91 = scmp.ne.s32.totalorder %s82, %s83
      %p92 = scmp.eq.s32.totalorder %s35, 0
      %p93 = por %p91, %p92
      %p94 = scmp.ne.s32.totalorder %s82, %s83
      %p95 = scmp.eq.s32.totalorder %s36, 7
      %p96 = por %p94, %p95
      %p98 = scmp.ne.s32.totalorder %s83, %s97
      %p99 = scmp.eq.s32.totalorder %s36, 0
      %p100 = por %p98, %p99
      %s102 = sadd.s32 %s101, 1
      %p105 = scmp.eq.s32.totalorder %s30, 7
      %p106 = scmp.ne.s32.totalorder %s101, %s103
      %p107 = scmp.eq.s32.totalorder %s30, 0
      %p108 = por %p106, %p107
      %p109 = scmp.ne.s32.totalorder %s101, %s103
      %p110 = scmp.eq.s32.totalorder %s35, 7
      %p111 = por %p109, %p110
      %p112 = scmp.ne.s32.totalorder %s103, %s104
      %p113 = scmp.eq.s32.totalorder %s35, 0
      %p114 = por %p112, %p113
      %p115 = scmp.ne.s32.totalorder %s103, %s104
      %p116 = scmp.eq.s32.totalorder %s36, 7
      %p117 = por %p115, %p116
      %p119 = scmp.ne.s32.totalorder %s104, %s118
      %p120 = scmp.eq.s32.totalorder %s36, 0
      %p121 = por %p119, %p120
      %s123 = sadd.s32 %s122, 1
      %p126 = scmp.eq.s32.totalorder %s30, 7
      %p127 = scmp.ne.s32.totalorder %s122, %s124
      %p128 = scmp.eq.s32.totalorder %s30, 0
      %p129 = por %p127, %p128
      %p130 = scmp.ne.s32.totalorder %s122, %s124
      %p131 = scmp.eq.s32.totalorder %s35, 7
      %p132 = por %p130, %p131
      %p133 = scmp.ne.s32.totalorder %s124, %s125
      %p134 = scmp.eq.s32.totalorder %s35, 0
      %p135 = por %p133, %p134
      %p136 = scmp.ne.s32.totalorder %s124, %s125
      %p137 = scmp.eq.s32.totalorder %s36, 7
      %p138 = por %p136, %p137
      %p140 = scmp.ne.s32.totalorder %s125, %s139
      %p141 = scmp.eq.s32.totalorder %s36, 0
      %p142 = por %p140, %p141
      %s144 = sadd.s32 %s143, 1
      %p147 = scmp.eq.s32.totalorder %s30, 7
      %p148 = scmp.ne.s32.totalorder %s143, %s145
      %p149 = scmp.eq.s32.totalorder %s30, 0
      %p150 = por %p148, %p149
      %p151 = scmp.ne.s32.totalorder %s143, %s145
      %p152 = scmp.eq.s32.totalorder %s35, 7
      %p153 = por %p151, %p152
      %p154 = scmp.ne.s32.totalorder %s145, %s146
      %p155 = scmp.eq.s32.totalorder %s35, 0
      %p156 = por %p154, %p155
      %p157 = scmp.ne.s32.totalorder %s145, %s146
      %p158 = scmp.eq.s32.totalorder %s36, 7
      %p159 = por %p157, %p158
      %p161 = scmp.ne.s32.totalorder %s146, %s160
      %p162 = scmp.eq.s32.totalorder %s36, 0
      %p163 = por %p161, %p162
      %s165 = sadd.s32 %s164, 1
      %p168 = scmp.eq.s32.totalorder %s30, 7
      %p169 = scmp.ne.s32.totalorder %s164, %s166
      %p170 = scmp.eq.s32.totalorder %s30, 0
      %p171 = por %p169, %p170
      %p172 = scmp.ne.s32.totalorder %s164, %s166
      %p173 = scmp.eq.s32.totalorder %s35, 7
      %p174 = por %p172, %p173
      %p175 = scmp.ne.s32.totalorder %s166, %s167
      %p176 = scmp.eq.s32.totalorder %s35, 0
      %p177 = por %p175, %p176
      %p178 = scmp.ne.s32.totalorder %s166, %s167
      %p179 = scmp.eq.s32.totalorder %s36, 7
      %p180 = por %p178, %p179
      %p182 = scmp.ne.s32.totalorder %s167, %s181
      %p183 = scmp.eq.s32.totalorder %s36, 0
      %p184 = por %p182, %p183
      %s186 = sadd.s32 %s185, 1
      %p189 = scmp.eq.s32.totalorder %s30, 7
      %p190 = scmp.ne.s32.totalorder %s185, %s187
      %p191 = scmp.eq.s32.totalorder %s30, 0
      %p192 = por %p190, %p191
      %p193 = scmp.ne.s32.totalorder %s185, %s187
      %p194 = scmp.eq.s32.totalorder %s35, 7
      %p195 = por %p193, %p194
      %p196 = scmp.ne.s32.totalorder %s187, %s188
      %p197 = scmp.eq.s32.totalorder %s35, 0
      %p198 = por %p196, %p197
      %p199 = scmp.ne.s32.totalorder %s187, %s188
      %p200 = scmp.eq.s32.totalorder %s36, 7
      %p201 = por %p199, %p200
      %p203 = scmp.ne.s32.totalorder %s188, %s202
      %p204 = scmp.eq.s32.totalorder %s36, 0
      %p205 = por %p203, %p204
      %s206 = ssub.s32 %s30, %s37
      %p207 = scmp.eq.s32.totalorder %s206, 0
      %s209 = sadd.s32 %s208, 1
      %s210 = scalar_select %p207, %s208, %s209
      %p213 = pneg %p207
      %p214 = scmp.eq.s32.totalorder %s30, 7
      %p215 = por %p213, %p214
      %p216 = scmp.ne.s32.totalorder %s208, %s211
      %p217 = scmp.eq.s32.totalorder %s30, 0
      %p218 = por %p216, %p217
      %p219 = scmp.ne.s32.totalorder %s208, %s211
      %p220 = scmp.eq.s32.totalorder %s35, 7
      %p221 = por %p219, %p220
      %p222 = scmp.ne.s32.totalorder %s211, %s212
      %p223 = scmp.eq.s32.totalorder %s35, 0
      %p224 = por %p222, %p223
      %p225 = scmp.ne.s32.totalorder %s211, %s212
      %p226 = scmp.eq.s32.totalorder %s36, 7
      %p227 = por %p225, %p226
      %p229 = scmp.ne.s32.totalorder %s212, %s228
      %p230 = scmp.eq.s32.totalorder %s36, 0
      %p231 = por %p229, %p230
      %s233 = sadd.s32 %s232, 1
      %p236 = scmp.eq.s32.totalorder %s30, 7
      %p237 = scmp.ne.s32.totalorder %s232, %s234
      %p238 = scmp.eq.s32.totalorder %s30, 0
      %p239 = por %p237, %p238
      %p240 = scmp.ne.s32.totalorder %s232, %s234
      %p241 = scmp.eq.s32.totalorder %s35, 7
      %p242 = por %p240, %p241
      %p243 = scmp.ne.s32.totalorder %s234, %s235
      %p244 = scmp.eq.s32.totalorder %s35, 0
      %p245 = por %p243, %p244
      %p246 = scmp.ne.s32.totalorder %s234, %s235
      %p247 = scmp.eq.s32.totalorder %s36, 7
      %p248 = por %p246, %p247
      %p250 = scmp.ne.s32.totalorder %s235, %s249
      %p251 = scmp.eq.s32.totalorder %s36, 0
      %p252 = por %p250, %p251
      %p253 = scmp.le.s32.totalorder 1, %s30
      %p254 = scmp.lt.s32.totalorder %s30, 9
      %p255 = pnand %p253, %p254
      %p256 = pneg %p255
      // Predicated region
      $region9: #{decoder_decode.1} parent=5 // pred_check
        _
      $region10: #{decoder_decode.1} parent=5 // pred_check_branch
        %258 = sbr.rel (%p255) target = $region12
      $region11: #{decoder_decode.1} parent=5 // pred_region
        %s259 = ssub.s32 %s30, 1
        // Predicated region
        $region13: #{decoder_decode.1} parent=11 // pred_check
          %p260 = pneg %p51
        $region14: #{decoder_decode.1} parent=11 // pred_check_branch
          %262 = sbr.rel (%p260) target = $region16
        $region15: #{decoder_decode.1} parent=11 // pred_region
          _
        $region16: #{decoder_decode.1} parent=11 // pred_fallthru
          _
        // Predicated region
        $region17: #{decoder_decode.1} parent=11 // pred_check
          %p263 = pneg %p72
        $region18: #{decoder_decode.1} parent=11 // pred_check_branch
          %265 = sbr.rel (%p263) target = $region20
        $region19: #{decoder_decode.1} parent=11 // pred_region
          _
        $region20: #{decoder_decode.1} parent=11 // pred_fallthru
          _
        // Predicated region
        $region21: #{decoder_decode.1} parent=11 // pred_check
          %p266 = pneg %p93
        $region22: #{decoder_decode.1} parent=11 // pred_check_branch
          %268 = sbr.rel (%p266) target = $region24
        $region23: #{decoder_decode.1} parent=11 // pred_region
          %s270 = ssub.s32 1536, 1536
          %271 = vsyncadd [#allocation5], %s270
          %s272 = sshll.u32 [#allocation4], 4
          %s273 = int_to_ptr.vmem [resolvable:$true] %s272
          %278 = dma.hbm_to_vmem [thread:$0]  %s3, 1536, %s273, [#allocation5], 128, 128, 8
        $region24: #{decoder_decode.1} parent=11 // pred_fallthru
          _
        // Predicated region
        $region25: #{decoder_decode.1} parent=11 // pred_check
          %p279 = pneg %p114
        $region26: #{decoder_decode.1} parent=11 // pred_check_branch
          %281 = sbr.rel (%p279) target = $region28
        $region27: #{decoder_decode.1} parent=11 // pred_region
          %s283 = ssub.s32 48, 48
          %284 = vsyncadd [#allocation8], %s283
          %s285 = sshll.u32 [#allocation7], 4
          %s286 = int_to_ptr.vmem [resolvable:$true] %s285
          %291 = dma.hbm_to_vmem [thread:$0]  %s4, 48, %s286, [#allocation8], 16, 16, 1
        $region28: #{decoder_decode.1} parent=11 // pred_fallthru
          _
        // Predicated region
        $region29: #{decoder_decode.1} parent=11 // pred_check
          %p292 = pneg %p135
        $region30: #{decoder_decode.1} parent=11 // pred_check_branch
          %294 = sbr.rel (%p292) target = $region32
        $region31: #{decoder_decode.1} parent=11 // pred_region
          %s296 = ssub.s32 48, 48
          %297 = vsyncadd [#allocation8], %s296
          %s298 = sshll.u32 [#allocation9], 4
          %s299 = int_to_ptr.vmem [resolvable:$true] %s298
          %304 = dma.hbm_to_vmem [thread:$0]  %s5, 48, %s299, [#allocation8], 16, 16, 1
        $region32: #{decoder_decode.1} parent=11 // pred_fallthru
          _
        // Predicated region
        $region33: #{decoder_decode.1} parent=11 // pred_check
          %p305 = pneg %p156
        $region34: #{decoder_decode.1} parent=11 // pred_check_branch
          %307 = sbr.rel (%p305) target = $region36
        $region35: #{decoder_decode.1} parent=11 // pred_region
          _
        $region36: #{decoder_decode.1} parent=11 // pred_fallthru
          _
        // Predicated region
        $region37: #{decoder_decode.1} parent=11 // pred_check
          %p308 = pneg %p177
        $region38: #{decoder_decode.1} parent=11 // pred_check_branch
          %310 = sbr.rel (%p308) target = $region40
        $region39: #{decoder_decode.1} parent=11 // pred_region
          _
        $region40: #{decoder_decode.1} parent=11 // pred_fallthru
          _
        // Predicated region
        $region41: #{decoder_decode.1} parent=11 // pred_check
          %p311 = pneg %p198
        $region42: #{decoder_decode.1} parent=11 // pred_check_branch
          %313 = sbr.rel (%p311) target = $region44
        $region43: #{decoder_decode.1} parent=11 // pred_region
          %s315 = ssub.s32 16, 16
          %316 = vsyncadd [#allocation11], %s315
          %s318 = sshll.u32 [#allocation10], 4
          %s319 = int_to_ptr.vmem [resolvable:$true] %s318
          %321 = dma.hbm_to_vmem [thread:$0]  %s8, 16, %s319, [#allocation11]
        $region44: #{decoder_decode.1} parent=11 // pred_fallthru
          _
      $region12: #{decoder_decode.1} parent=5 // pred_fallthru
        _
      %p322 = scmp.lt.s32.totalorder %s30, 8
      // Predicated region
      $region45: #{decoder_decode.1} parent=5 // pred_check
        %p323 = pneg %p322
      $region46: #{decoder_decode.1} parent=5 // pred_check_branch
        %325 = sbr.rel (%p323) target = $region48
      $region47: #{decoder_decode.1} parent=5 // pred_region
        _
      $region48: #{decoder_decode.1} parent=5 // pred_fallthru
        _
      %p326 = scmp.le.s32.totalorder 1, %s30
      %p327 = scmp.lt.s32.totalorder %s30, 9
      %p328 = pnand %p326, %p327
      %p329 = pneg %p328
      // Predicated region
      $region49: #{decoder_decode.1} parent=5 // pred_check
        _
      $region50: #{decoder_decode.1} parent=5 // pred_check_branch
        %331 = sbr.rel (%p328) target = $region52
      $region51: #{decoder_decode.1} parent=5 // pred_region
        %s332 = ssub.s32 %s30, 1
        // Predicated region
        $region53: #{decoder_decode.1} parent=51 // pred_check
          %p333 = pneg %p93
        $region54: #{decoder_decode.1} parent=51 // pred_check_branch
          %335 = sbr.rel (%p333) target = $region56
        $region55: #{decoder_decode.1} parent=51 // pred_region
          %336 = dma.done [#allocation5], 1536
        $region56: #{decoder_decode.1} parent=51 // pred_fallthru
          _
        // Predicated region
        $region57: #{decoder_decode.1} parent=51 // pred_check
          %p337 = pneg %p114
        $region58: #{decoder_decode.1} parent=51 // pred_check_branch
          %339 = sbr.rel (%p337) target = $region60
        $region59: #{decoder_decode.1} parent=51 // pred_region
          %340 = dma.done [#allocation8], 48
        $region60: #{decoder_decode.1} parent=51 // pred_fallthru
          _
        // Predicated region
        $region61: #{decoder_decode.1} parent=51 // pred_check
          %p341 = pneg %p135
        $region62: #{decoder_decode.1} parent=51 // pred_check_branch
          %343 = sbr.rel (%p341) target = $region64
        $region63: #{decoder_decode.1} parent=51 // pred_region
          %344 = dma.done [#allocation8], 48
        $region64: #{decoder_decode.1} parent=51 // pred_fallthru
          _
        // Predicated region
        $region65: #{decoder_decode.1} parent=51 // pred_check
          %p345 = pneg %p198
        $region66: #{decoder_decode.1} parent=51 // pred_check_branch
          %347 = sbr.rel (%p345) target = $region68
        $region67: #{decoder_decode.1} parent=51 // pred_region
          %348 = dma.done [#allocation11], 16
        $region68: #{decoder_decode.1} parent=51 // pred_fallthru
          _
        %p349 = pneg %p51
        %p350 = pneg %p48
        %p351 = pneg %p72
        %p352 = pneg %p69
        %p353 = pneg %p93
        %p354 = pneg %p90
        %p355 = pneg %p114
        %p356 = pneg %p111
        %p357 = pneg %p135
        %p358 = pneg %p132
        %p359 = pneg %p156
        %p360 = pneg %p153
        %p361 = pneg %p177
        %p362 = pneg %p174
        %p363 = pneg %p198
        %p364 = pneg %p195
        %p365 = pneg %p224
        %p366 = pneg %p221
        %s367 = sand.u32 %s211, 1
        %s368 = scalar_lea.sflag [#allocation6], %s367
        %s369 = sand.u32 %s211, 1
        %s370 = scalar_lea.vmem [#allocation12], %s369
        %p371 = pneg %p245
        %p372 = pneg %p242
        %p373 = scmp.eq.s32.totalorder %s35, 0
        // Predicated region
        $region69: #{decoder_decode.1} parent=51 // pred_check
          %p374 = pneg %p373
        $region70: #{decoder_decode.1} parent=51 // pred_check_branch
          %376 = sbr.rel (%p374) target = $region72
        $region71: #{decoder_decode.1} parent=51 // pred_region
          %v377 = vld [vmem:[#allocation10] sm:$0x1]
          %vm378 = vcmask 253952
          %379 = vst.msk [vmem:[#allocation13] sm:$0x1] %vm378, %v377
        $region72: #{decoder_decode.1} parent=51 // pred_fallthru
          _
        %s380 = sld [smem:[#allocation3 + %s35]]
        %v381 = vlaneseq
        %v382 = vand.u32 %v381, 127
        %v383 = vstv %s380
        %vm384 = vcmp.eq.s32.totalorder %v382, %v383
        %v385 = vsel %vm384, 1, 0
        %v386 = vcvt.s32.f32 %v385
        %v387 = vld [vmem:[%s1] sm:$0xff]
        %v388 = vld [vmem:[%s1 + $0x8] sm:$0xff]
        %v389 = vld [vmem:[%s1 + $0x10] sm:$0xff]
        %v390 = vld [vmem:[%s1 + $0x18] sm:$0xff]
        %v391 = vld [vmem:[%s1 + $0x20] sm:$0xff]
        %v392 = vld [vmem:[%s1 + $0x28] sm:$0xff]
        %v393 = vld [vmem:[%s1 + $0x30] sm:$0xff]
        %v394 = vld [vmem:[%s1 + $0x38] sm:$0xff]
        %vm395 = vcmask 523264
        %v397 = vsel %vm395, %v386, 0
        %399 = vmatprep.subr.mxu0 0.0
        %400 = vmatpush1.msra.mxu0 %v387
        %401 = vmatprep.subr.mxu0 0.0
        %402 = vmatpush1.msra.mxu0 %v388
        %403 = vmatprep.subr.mxu0 0.0
        %404 = vmatpush1.msra.mxu0 %v389
        %405 = vmatprep.subr.mxu0 0.0
        %406 = vmatpush1.msra.mxu0 %v390
        %407 = vmatprep.subr.mxu0 0.0
        %408 = vmatpush1.msra.mxu0 %v391
        %409 = vmatprep.subr.mxu0 0.0
        %410 = vmatpush1.msra.mxu0 %v392
        %411 = vmatprep.subr.mxu0 0.0
        %412 = vmatpush1.msra.mxu0 %v393
        %413 = vmatprep.subr.mxu0 0.0
        %414 = vmatpush1.msra.mxu0 %v394
        %415 = vmatprep.subr.mxu0 0.0
        %416 = vmatpush1.msra.mxu0 0.0
        %417 = vmatprep.subr.mxu0 0.0
        %418 = vmatpush1.msra.mxu0 0.0
        %419 = vmatprep.subr.mxu0 0.0
        %420 = vmatpush1.msra.mxu0 0.0
        %421 = vmatprep.subr.mxu0 0.0
        %422 = vmatpush1.msra.mxu0 0.0
        %423 = vmatprep.subr.mxu0 0.0
        %424 = vmatpush1.msra.mxu0 0.0
        %425 = vmatprep.subr.mxu0 0.0
        %426 = vmatpush1.msra.mxu0 0.0
        %427 = vmatprep.subr.mxu0 0.0
        %428 = vmatpush1.msra.mxu0 0.0
        %429 = vmatprep.subr.mxu0 0.0
        %430 = vmatpush1.msra.mxu0 0.0
        %431 = vmatprep.subr.mxu0 0.0
        %432 = vmatpush1.msra.mxu0 0.0
        %433 = vmatprep.subr.mxu0 0.0
        %434 = vmatpush1.msra.mxu0 0.0
        %435 = vmatprep.subr.mxu0 0.0
        %436 = vmatpush1.msra.mxu0 0.0
        %437 = vmatprep.subr.mxu0 0.0
        %438 = vmatpush1.msra.mxu0 0.0
        %439 = vmatprep.subr.mxu0 0.0
        %440 = vmatpush1.msra.mxu0 0.0
        %441 = vmatprep.subr.mxu0 0.0
        %442 = vmatpush1.msra.mxu0 0.0
        %443 = vmatprep.subr.mxu0 0.0
        %444 = vmatpush1.msra.mxu0 0.0
        %445 = vmatprep.subr.mxu0 0.0
        %446 = vmatpush1.msra.mxu0 0.0
        %447 = vmatprep.subr.mxu0 0.0
        %448 = vmatpush1.msra.mxu0 0.0
        %449 = vmatprep.subr.mxu0 0.0
        %450 = vmatpush1.msra.mxu0 0.0
        %451 = vmatprep.subr.mxu0 0.0
        %452 = vmatpush1.msra.mxu0 0.0
        %453 = vmatprep.subr.mxu0 0.0
        %454 = vmatpush1.msra.mxu0 0.0
        %455 = vmatprep.subr.mxu0 0.0
        %456 = vmatpush1.msra.mxu0 0.0
        %457 = vmatprep.subr.mxu0 0.0
        %458 = vmatpush1.msra.mxu0 0.0
        %459 = vmatprep.subr.mxu0 0.0
        %460 = vmatpush1.msra.mxu0 0.0
        %461 = vmatprep.subr.mxu0 0.0
        %462 = vmatpush1.msra.mxu0 0.0
        %463 = vmatprep.mubr.f32.mxu0 0.0
        %464 = vmatmul.mubr.f32.gmra.mrb[0].mxu0 %v397
        %v465 = vpop.f32.mrb[0].mxu0
        %v466 = vadd.f32 0.0, %v465
        %v467 = vpop.f32.mrb[0].mxu0
        %468 = vdwg.mxu0
        %v469 = vmax.f32 %v466, 0.0
        %v470 = vld [vmem:[#allocation13] sm:$0x1]
        %v471 = vld [vmem:[%s2] sm:$0xff]
        %v472 = vld [vmem:[%s2 + $0x8] sm:$0xff]
        %v473 = vld [vmem:[%s2 + $0x10] sm:$0xff]
        %v474 = vld [vmem:[%s2 + $0x18] sm:$0xff]
        %v475 = vld [vmem:[#allocation7] sm:$0x1]
        %vm476 = vcmask 261120
        %v478 = vsel %vm476, %v469, 0
        %480 = vmatprep.subr.mxu0 0.0
        %481 = vmatpush1.msra.mxu0 %v471
        %482 = vmatprep.subr.mxu0 0.0
        %483 = vmatpush1.msra.mxu0 %v472
        %484 = vmatprep.subr.mxu0 0.0
        %485 = vmatpush1.msra.mxu0 %v473
        %486 = vmatprep.subr.mxu0 0.0
        %487 = vmatpush1.msra.mxu0 %v474
        %488 = vmatprep.subr.mxu0 0.0
        %489 = vmatpush1.msra.mxu0 0.0
        %490 = vmatprep.subr.mxu0 0.0
        %491 = vmatpush1.msra.mxu0 0.0
        %492 = vmatprep.subr.mxu0 0.0
        %493 = vmatpush1.msra.mxu0 0.0
        %494 = vmatprep.subr.mxu0 0.0
        %495 = vmatpush1.msra.mxu0 0.0
        %496 = vmatprep.subr.mxu0 0.0
        %497 = vmatpush1.msra.mxu0 0.0
        %498 = vmatprep.subr.mxu0 0.0
        %499 = vmatpush1.msra.mxu0 0.0
        %500 = vmatprep.subr.mxu0 0.0
        %501 = vmatpush1.msra.mxu0 0.0
        %502 = vmatprep.subr.mxu0 0.0
        %503 = vmatpush1.msra.mxu0 0.0
        %504 = vmatprep.subr.mxu0 0.0
        %505 = vmatpush1.msra.mxu0 0.0
        %506 = vmatprep.subr.mxu0 0.0
        %507 = vmatpush1.msra.mxu0 0.0
        %508 = vmatprep.subr.mxu0 0.0
        %509 = vmatpush1.msra.mxu0 0.0
        %510 = vmatprep.subr.mxu0 0.0
        %511 = vmatpush1.msra.mxu0 0.0
        %512 = vmatprep.subr.mxu0 0.0
        %513 = vmatpush1.msra.mxu0 0.0
        %514 = vmatprep.subr.mxu0 0.0
        %515 = vmatpush1.msra.mxu0 0.0
        %516 = vmatprep.subr.mxu0 0.0
        %517 = vmatpush1.msra.mxu0 0.0
        %518 = vmatprep.subr.mxu0 0.0
        %519 = vmatpush1.msra.mxu0 0.0
        %520 = vmatprep.subr.mxu0 0.0
        %521 = vmatpush1.msra.mxu0 0.0
        %522 = vmatprep.subr.mxu0 0.0
        %523 = vmatpush1.msra.mxu0 0.0
        %524 = vmatprep.subr.mxu0 0.0
        %525 = vmatpush1.msra.mxu0 0.0
        %526 = vmatprep.subr.mxu0 0.0
        %527 = vmatpush1.msra.mxu0 0.0
        %528 = vmatprep.subr.mxu0 0.0
        %529 = vmatpush1.msra.mxu0 0.0
        %530 = vmatprep.subr.mxu0 0.0
        %531 = vmatpush1.msra.mxu0 0.0
        %532 = vmatprep.subr.mxu0 0.0
        %533 = vmatpush1.msra.mxu0 0.0
        %534 = vmatprep.subr.mxu0 0.0
        %535 = vmatpush1.msra.mxu0 0.0
        %536 = vmatprep.subr.mxu0 0.0
        %537 = vmatpush1.msra.mxu0 0.0
        %538 = vmatprep.subr.mxu0 0.0
        %539 = vmatpush1.msra.mxu0 0.0
        %540 = vmatprep.subr.mxu0 0.0
        %541 = vmatpush1.msra.mxu0 0.0
        %542 = vmatprep.subr.mxu0 0.0
        %543 = vmatpush1.msra.mxu0 0.0
        %544 = vmatprep.mubr.f32.mxu0 0.0
        %545 = vmatmul.mubr.f32.gmra.mrb[0].mxu0 %v478
        %v546 = vpop.f32.mrb[0].mxu0
        %v547 = vadd.f32 %v475, %v546
        %v548 = vpop.f32.mrb[0].mxu0
        %549 = vdwg.mxu0
        %v550 = vld [vmem:[#allocation4] sm:$0xff]
        %v551 = vld [vmem:[#allocation4 + $0x8] sm:$0xff]
        %v552 = vld [vmem:[#allocation4 + $0x10] sm:$0xff]
        %v553 = vld [vmem:[#allocation4 + $0x18] sm:$0xff]
        %v554 = vld [vmem:[#allocation9] sm:$0x1]
        %v556 = vsel %vm476, %v470, 0
        %558 = vmatprep.subr.mxu0 0.0
        %559 = vmatpush1.msra.mxu0 %v550
        %560 = vmatprep.subr.mxu0 0.0
        %561 = vmatpush1.msra.mxu0 %v551
        %562 = vmatprep.subr.mxu0 0.0
        %563 = vmatpush1.msra.mxu0 %v552
        %564 = vmatprep.subr.mxu0 0.0
        %565 = vmatpush1.msra.mxu0 %v553
        %566 = vmatprep.subr.mxu0 0.0
        %567 = vmatpush1.msra.mxu0 0.0
        %568 = vmatprep.subr.mxu0 0.0
        %569 = vmatpush1.msra.mxu0 0.0
        %570 = vmatprep.subr.mxu0 0.0
        %571 = vmatpush1.msra.mxu0 0.0
        %572 = vmatprep.subr.mxu0 0.0
        %573 = vmatpush1.msra.mxu0 0.0
        %574 = vmatprep.subr.mxu0 0.0
        %575 = vmatpush1.msra.mxu0 0.0
        %576 = vmatprep.subr.mxu0 0.0
        %577 = vmatpush1.msra.mxu0 0.0
        %578 = vmatprep.subr.mxu0 0.0
        %579 = vmatpush1.msra.mxu0 0.0
        %580 = vmatprep.subr.mxu0 0.0
        %581 = vmatpush1.msra.mxu0 0.0
        %582 = vmatprep.subr.mxu0 0.0
        %583 = vmatpush1.msra.mxu0 0.0
        %584 = vmatprep.subr.mxu0 0.0
        %585 = vmatpush1.msra.mxu0 0.0
        %586 = vmatprep.subr.mxu0 0.0
        %587 = vmatpush1.msra.mxu0 0.0
        %588 = vmatprep.subr.mxu0 0.0
        %589 = vmatpush1.msra.mxu0 0.0
        %590 = vmatprep.subr.mxu0 0.0
        %591 = vmatpush1.msra.mxu0 0.0
        %592 = vmatprep.subr.mxu0 0.0
        %593 = vmatpush1.msra.mxu0 0.0
        %594 = vmatprep.subr.mxu0 0.0
        %595 = vmatpush1.msra.mxu0 0.0
        %596 = vmatprep.subr.mxu0 0.0
        %597 = vmatpush1.msra.mxu0 0.0
        %598 = vmatprep.subr.mxu0 0.0
        %599 = vmatpush1.msra.mxu0 0.0
        %600 = vmatprep.subr.mxu0 0.0
        %601 = vmatpush1.msra.mxu0 0.0
        %602 = vmatprep.subr.mxu0 0.0
        %603 = vmatpush1.msra.mxu0 0.0
        %604 = vmatprep.subr.mxu0 0.0
        %605 = vmatpush1.msra.mxu0 0.0
        %606 = vmatprep.subr.mxu0 0.0
        %607 = vmatpush1.msra.mxu0 0.0
        %608 = vmatprep.subr.mxu0 0.0
        %609 = vmatpush1.msra.mxu0 0.0
        %610 = vmatprep.subr.mxu0 0.0
        %611 = vmatpush1.msra.mxu0 0.0
        %612 = vmatprep.subr.mxu0 0.0
        %613 = vmatpush1.msra.mxu0 0.0
        %614 = vmatprep.subr.mxu0 0.0
        %615 = vmatpush1.msra.mxu0 0.0
        %616 = vmatprep.subr.mxu0 0.0
        %617 = vmatpush1.msra.mxu0 0.0
        %618 = vmatprep.subr.mxu0 0.0
        %619 = vmatpush1.msra.mxu0 0.0
        %620 = vmatprep.subr.mxu0 0.0
        %621 = vmatpush1.msra.mxu0 0.0
        %622 = vmatprep.mubr.f32.mxu0 0.0
        %623 = vmatmul.mubr.f32.gmra.mrb[0].mxu0 %v556
        %v624 = vpop.f32.mrb[0].mxu0
        %v625 = vadd.f32 %v554, %v624
        %v626 = vpop.f32.mrb[0].mxu0
        %627 = vdwg.mxu0
        %s628 = scalar_lea.vmem %s2, 32
        %v629 = vld [vmem:[%s628] sm:$0xff]
        %v630 = vld [vmem:[%s628 + $0x8] sm:$0xff]
        %v631 = vld [vmem:[%s628 + $0x10] sm:$0xff]
        %v632 = vld [vmem:[%s628 + $0x18] sm:$0xff]
        %s633 = scalar_lea.vmem [#allocation7], 1
        %v634 = vld [vmem:[%s633] sm:$0x1]
        %635 = vmatprep.subr.mxu0 0.0
        %636 = vmatpush1.msra.mxu0 %v629
        %637 = vmatprep.subr.mxu0 0.0
        %638 = vmatpush1.msra.mxu0 %v630
        %639 = vmatprep.subr.mxu0 0.0
        %640 = vmatpush1.msra.mxu0 %v631
        %641 = vmatprep.subr.mxu0 0.0
        %642 = vmatpush1.msra.mxu0 %v632
        %643 = vmatprep.subr.mxu0 0.0
        %644 = vmatpush1.msra.mxu0 0.0
        %645 = vmatprep.subr.mxu0 0.0
        %646 = vmatpush1.msra.mxu0 0.0
        %647 = vmatprep.subr.mxu0 0.0
        %648 = vmatpush1.msra.mxu0 0.0
        %649 = vmatprep.subr.mxu0 0.0
        %650 = vmatpush1.msra.mxu0 0.0
        %651 = vmatprep.subr.mxu0 0.0
        %652 = vmatpush1.msra.mxu0 0.0
        %653 = vmatprep.subr.mxu0 0.0
        %654 = vmatpush1.msra.mxu0 0.0
        %655 = vmatprep.subr.mxu0 0.0
        %656 = vmatpush1.msra.mxu0 0.0
        %657 = vmatprep.subr.mxu0 0.0
        %658 = vmatpush1.msra.mxu0 0.0
        %659 = vmatprep.subr.mxu0 0.0
        %660 = vmatpush1.msra.mxu0 0.0
        %661 = vmatprep.subr.mxu0 0.0
        %662 = vmatpush1.msra.mxu0 0.0
        %663 = vmatprep.subr.mxu0 0.0
        %664 = vmatpush1.msra.mxu0 0.0
        %665 = vmatprep.subr.mxu0 0.0
        %666 = vmatpush1.msra.mxu0 0.0
        %667 = vmatprep.subr.mxu0 0.0
        %668 = vmatpush1.msra.mxu0 0.0
        %669 = vmatprep.subr.mxu0 0.0
        %670 = vmatpush1.msra.mxu0 0.0
        %671 = vmatprep.subr.mxu0 0.0
        %672 = vmatpush1.msra.mxu0 0.0
        %673 = vmatprep.subr.mxu0 0.0
        %674 = vmatpush1.msra.mxu0 0.0
        %675 = vmatprep.subr.mxu0 0.0
        %676 = vmatpush1.msra.mxu0 0.0
        %677 = vmatprep.subr.mxu0 0.0
        %678 = vmatpush1.msra.mxu0 0.0
        %679 = vmatprep.subr.mxu0 0.0
        %680 = vmatpush1.msra.mxu0 0.0
        %681 = vmatprep.subr.mxu0 0.0
        %682 = vmatpush1.msra.mxu0 0.0
        %683 = vmatprep.subr.mxu0 0.0
        %684 = vmatpush1.msra.mxu0 0.0
        %685 = vmatprep.subr.mxu0 0.0
        %686 = vmatpush1.msra.mxu0 0.0
        %687 = vmatprep.subr.mxu0 0.0
        %688 = vmatpush1.msra.mxu0 0.0
        %689 = vmatprep.subr.mxu0 0.0
        %690 = vmatpush1.msra.mxu0 0.0
        %691 = vmatprep.subr.mxu0 0.0
        %692 = vmatpush1.msra.mxu0 0.0
        %693 = vmatprep.subr.mxu0 0.0
        %694 = vmatpush1.msra.mxu0 0.0
        %695 = vmatprep.subr.mxu0 0.0
        %696 = vmatpush1.msra.mxu0 0.0
        %697 = vmatprep.subr.mxu0 0.0
        %698 = vmatpush1.msra.mxu0 0.0
        %699 = vmatprep.mubr.f32.mxu0 0.0
        %700 = vmatmul.mubr.f32.gmra.mrb[0].mxu0 %v478
        %v701 = vpop.f32.mrb[0].mxu0
        %v702 = vadd.f32 %v634, %v701
        %v703 = vpop.f32.mrb[0].mxu0
        %704 = vdwg.mxu0
        %s705 = scalar_lea.vmem [#allocation4], 32
        %v706 = vld [vmem:[%s705] sm:$0xff]
        %v707 = vld [vmem:[%s705 + $0x8] sm:$0xff]
        %v708 = vld [vmem:[%s705 + $0x10] sm:$0xff]
        %v709 = vld [vmem:[%s705 + $0x18] sm:$0xff]
        %s710 = scalar_lea.vmem [#allocation9], 1
        %v711 = vld [vmem:[%s710] sm:$0x1]
        %712 = vmatprep.subr.mxu0 0.0
        %713 = vmatpush1.msra.mxu0 %v706
        %714 = vmatprep.subr.mxu0 0.0
        %715 = vmatpush1.msra.mxu0 %v707
        %716 = vmatprep.subr.mxu0 0.0
        %717 = vmatpush1.msra.mxu0 %v708
        %718 = vmatprep.subr.mxu0 0.0
        %719 = vmatpush1.msra.mxu0 %v709
        %720 = vmatprep.subr.mxu0 0.0
        %721 = vmatpush1.msra.mxu0 0.0
        %722 = vmatprep.subr.mxu0 0.0
        %723 = vmatpush1.msra.mxu0 0.0
        %724 = vmatprep.subr.mxu0 0.0
        %725 = vmatpush1.msra.mxu0 0.0
        %726 = vmatprep.subr.mxu0 0.0
        %727 = vmatpush1.msra.mxu0 0.0
        %728 = vmatprep.subr.mxu0 0.0
        %729 = vmatpush1.msra.mxu0 0.0
        %730 = vmatprep.subr.mxu0 0.0
        %731 = vmatpush1.msra.mxu0 0.0
        %732 = vmatprep.subr.mxu0 0.0
        %733 = vmatpush1.msra.mxu0 0.0
        %734 = vmatprep.subr.mxu0 0.0
        %735 = vmatpush1.msra.mxu0 0.0
        %736 = vmatprep.subr.mxu0 0.0
        %737 = vmatpush1.msra.mxu0 0.0
        %738 = vmatprep.subr.mxu0 0.0
        %739 = vmatpush1.msra.mxu0 0.0
        %740 = vmatprep.subr.mxu0 0.0
        %741 = vmatpush1.msra.mxu0 0.0
        %742 = vmatprep.subr.mxu0 0.0
        %743 = vmatpush1.msra.mxu0 0.0
        %744 = vmatprep.subr.mxu0 0.0
        %745 = vmatpush1.msra.mxu0 0.0
        %746 = vmatprep.subr.mxu0 0.0
        %747 = vmatpush1.msra.mxu0 0.0
        %748 = vmatprep.subr.mxu0 0.0
        %749 = vmatpush1.msra.mxu0 0.0
        %750 = vmatprep.subr.mxu0 0.0
        %751 = vmatpush1.msra.mxu0 0.0
        %752 = vmatprep.subr.mxu0 0.0
        %753 = vmatpush1.msra.mxu0 0.0
        %754 = vmatprep.subr.mxu0 0.0
        %755 = vmatpush1.msra.mxu0 0.0
        %756 = vmatprep.subr.mxu0 0.0
        %757 = vmatpush1.msra.mxu0 0.0
        %758 = vmatprep.subr.mxu0 0.0
        %759 = vmatpush1.msra.mxu0 0.0
        %760 = vmatprep.subr.mxu0 0.0
        %761 = vmatpush1.msra.mxu0 0.0
        %762 = vmatprep.subr.mxu0 0.0
        %763 = vmatpush1.msra.mxu0 0.0
        %764 = vmatprep.subr.mxu0 0.0
        %765 = vmatpush1.msra.mxu0 0.0
        %766 = vmatprep.subr.mxu0 0.0
        %767 = vmatpush1.msra.mxu0 0.0
        %768 = vmatprep.subr.mxu0 0.0
        %769 = vmatpush1.msra.mxu0 0.0
        %770 = vmatprep.subr.mxu0 0.0
        %771 = vmatpush1.msra.mxu0 0.0
        %772 = vmatprep.subr.mxu0 0.0
        %773 = vmatpush1.msra.mxu0 0.0
        %774 = vmatprep.subr.mxu0 0.0
        %775 = vmatpush1.msra.mxu0 0.0
        %776 = vmatprep.mubr.f32.mxu0 0.0
        %777 = vmatmul.mubr.f32.gmra.mrb[0].mxu0 %v556
        %v778 = vpop.f32.mrb[0].mxu0
        %v779 = vadd.f32 %v711, %v778
        %v780 = vpop.f32.mrb[0].mxu0
        %781 = vdwg.mxu0
        %s782 = scalar_lea.vmem %s2, 64
        %v783 = vld [vmem:[%s782] sm:$0xff]
        %v784 = vld [vmem:[%s782 + $0x8] sm:$0xff]
        %v785 = vld [vmem:[%s782 + $0x10] sm:$0xff]
        %v786 = vld [vmem:[%s782 + $0x18] sm:$0xff]
        %s787 = scalar_lea.vmem [#allocation7], 2
        %v788 = vld [vmem:[%s787] sm:$0x1]
        %789 = vmatprep.subr.mxu0 0.0
        %790 = vmatpush1.msra.mxu0 %v783
        %791 = vmatprep.subr.mxu0 0.0
        %792 = vmatpush1.msra.mxu0 %v784
        %793 = vmatprep.subr.mxu0 0.0
        %794 = vmatpush1.msra.mxu0 %v785
        %795 = vmatprep.subr.mxu0 0.0
        %796 = vmatpush1.msra.mxu0 %v786
        %797 = vmatprep.subr.mxu0 0.0
        %798 = vmatpush1.msra.mxu0 0.0
        %799 = vmatprep.subr.mxu0 0.0
        %800 = vmatpush1.msra.mxu0 0.0
        %801 = vmatprep.subr.mxu0 0.0
        %802 = vmatpush1.msra.mxu0 0.0
        %803 = vmatprep.subr.mxu0 0.0
        %804 = vmatpush1.msra.mxu0 0.0
        %805 = vmatprep.subr.mxu0 0.0
        %806 = vmatpush1.msra.mxu0 0.0
        %807 = vmatprep.subr.mxu0 0.0
        %808 = vmatpush1.msra.mxu0 0.0
        %809 = vmatprep.subr.mxu0 0.0
        %810 = vmatpush1.msra.mxu0 0.0
        %811 = vmatprep.subr.mxu0 0.0
        %812 = vmatpush1.msra.mxu0 0.0
        %813 = vmatprep.subr.mxu0 0.0
        %814 = vmatpush1.msra.mxu0 0.0
        %815 = vmatprep.subr.mxu0 0.0
        %816 = vmatpush1.msra.mxu0 0.0
        %817 = vmatprep.subr.mxu0 0.0
        %818 = vmatpush1.msra.mxu0 0.0
        %819 = vmatprep.subr.mxu0 0.0
        %820 = vmatpush1.msra.mxu0 0.0
        %821 = vmatprep.subr.mxu0 0.0
        %822 = vmatpush1.msra.mxu0 0.0
        %823 = vmatprep.subr.mxu0 0.0
        %824 = vmatpush1.msra.mxu0 0.0
        %825 = vmatprep.subr.mxu0 0.0
        %826 = vmatpush1.msra.mxu0 0.0
        %827 = vmatprep.subr.mxu0 0.0
        %828 = vmatpush1.msra.mxu0 0.0
        %829 = vmatprep.subr.mxu0 0.0
        %830 = vmatpush1.msra.mxu0 0.0
        %831 = vmatprep.subr.mxu0 0.0
        %832 = vmatpush1.msra.mxu0 0.0
        %833 = vmatprep.subr.mxu0 0.0
        %834 = vmatpush1.msra.mxu0 0.0
        %835 = vmatprep.subr.mxu0 0.0
        %836 = vmatpush1.msra.mxu0 0.0
        %837 = vmatprep.subr.mxu0 0.0
        %838 = vmatpush1.msra.mxu0 0.0
        %839 = vmatprep.subr.mxu0 0.0
        %840 = vmatpush1.msra.mxu0 0.0
        %841 = vmatprep.subr.mxu0 0.0
        %842 = vmatpush1.msra.mxu0 0.0
        %843 = vmatprep.subr.mxu0 0.0
        %844 = vmatpush1.msra.mxu0 0.0
        %845 = vmatprep.subr.mxu0 0.0
        %846 = vmatpush1.msra.mxu0 0.0
        %847 = vmatprep.subr.mxu0 0.0
        %848 = vmatpush1.msra.mxu0 0.0
        %849 = vmatprep.subr.mxu0 0.0
        %850 = vmatpush1.msra.mxu0 0.0
        %851 = vmatprep.subr.mxu0 0.0
        %852 = vmatpush1.msra.mxu0 0.0
        %853 = vmatprep.mubr.f32.mxu0 0.0
        %854 = vmatmul.mubr.f32.gmra.mrb[0].mxu0 %v478
        %v855 = vpop.f32.mrb[0].mxu0
        %v856 = vadd.f32 %v788, %v855
        %v857 = vpop.f32.mrb[0].mxu0
        %858 = vdwg.mxu0
        %s859 = scalar_lea.vmem [#allocation4], 64
        %v860 = vld [vmem:[%s859] sm:$0xff]
        %v861 = vld [vmem:[%s859 + $0x8] sm:$0xff]
        %v862 = vld [vmem:[%s859 + $0x10] sm:$0xff]
        %v863 = vld [vmem:[%s859 + $0x18] sm:$0xff]
        %s864 = scalar_lea.vmem [#allocation9], 2
        %v865 = vld [vmem:[%s864] sm:$0x1]
        %866 = vmatprep.subr.mxu0 0.0
        %867 = vmatpush1.msra.mxu0 %v860
        %868 = vmatprep.subr.mxu0 0.0
        %869 = vmatpush1.msra.mxu0 %v861
        %870 = vmatprep.subr.mxu0 0.0
        %871 = vmatpush1.msra.mxu0 %v862
        %872 = vmatprep.subr.mxu0 0.0
        %873 = vmatpush1.msra.mxu0 %v863
        %874 = vmatprep.subr.mxu0 0.0
        %875 = vmatpush1.msra.mxu0 0.0
        %876 = vmatprep.subr.mxu0 0.0
        %877 = vmatpush1.msra.mxu0 0.0
        %878 = vmatprep.subr.mxu0 0.0
        %879 = vmatpush1.msra.mxu0 0.0
        %880 = vmatprep.subr.mxu0 0.0
        %881 = vmatpush1.msra.mxu0 0.0
        %882 = vmatprep.subr.mxu0 0.0
        %883 = vmatpush1.msra.mxu0 0.0
        %884 = vmatprep.subr.mxu0 0.0
        %885 = vmatpush1.msra.mxu0 0.0
        %886 = vmatprep.subr.mxu0 0.0
        %887 = vmatpush1.msra.mxu0 0.0
        %888 = vmatprep.subr.mxu0 0.0
        %889 = vmatpush1.msra.mxu0 0.0
        %890 = vmatprep.subr.mxu0 0.0
        %891 = vmatpush1.msra.mxu0 0.0
        %892 = vmatprep.subr.mxu0 0.0
        %893 = vmatpush1.msra.mxu0 0.0
        %894 = vmatprep.subr.mxu0 0.0
        %895 = vmatpush1.msra.mxu0 0.0
        %896 = vmatprep.subr.mxu0 0.0
        %897 = vmatpush1.msra.mxu0 0.0
        %898 = vmatprep.subr.mxu0 0.0
        %899 = vmatpush1.msra.mxu0 0.0
        %900 = vmatprep.subr.mxu0 0.0
        %901 = vmatpush1.msra.mxu0 0.0
        %902 = vmatprep.subr.mxu0 0.0
        %903 = vmatpush1.msra.mxu0 0.0
        %904 = vmatprep.subr.mxu0 0.0
        %905 = vmatpush1.msra.mxu0 0.0
        %906 = vmatprep.subr.mxu0 0.0
        %907 = vmatpush1.msra.mxu0 0.0
        %908 = vmatprep.subr.mxu0 0.0
        %909 = vmatpush1.msra.mxu0 0.0
        %910 = vmatprep.subr.mxu0 0.0
        %911 = vmatpush1.msra.mxu0 0.0
        %912 = vmatprep.subr.mxu0 0.0
        %913 = vmatpush1.msra.mxu0 0.0
        %914 = vmatprep.subr.mxu0 0.0
        %915 = vmatpush1.msra.mxu0 0.0
        %916 = vmatprep.subr.mxu0 0.0
        %917 = vmatpush1.msra.mxu0 0.0
        %918 = vmatprep.subr.mxu0 0.0
        %919 = vmatpush1.msra.mxu0 0.0
        %920 = vmatprep.subr.mxu0 0.0
        %921 = vmatpush1.msra.mxu0 0.0
        %922 = vmatprep.subr.mxu0 0.0
        %923 = vmatpush1.msra.mxu0 0.0
        %924 = vmatprep.subr.mxu0 0.0
        %925 = vmatpush1.msra.mxu0 0.0
        %926 = vmatprep.subr.mxu0 0.0
        %927 = vmatpush1.msra.mxu0 0.0
        %928 = vmatprep.subr.mxu0 0.0
        %929 = vmatpush1.msra.mxu0 0.0
        %930 = vmatprep.mubr.f32.mxu0 0.0
        %931 = vmatmul.mubr.f32.gmra.mrb[0].mxu0 %v556
        %v932 = vpop.f32.mrb[0].mxu0
        %v933 = vadd.f32 %v865, %v932
        %v934 = vpop.f32.mrb[0].mxu0
        %935 = vdwg.mxu0
        %v936 = vadd.f32 %v547, %v625
        %v937 = vxor.u32 %v936, 2147483648
        %v938 = vmul.f32 %v937, 1.442695
        %v939 = vpow.pop %v938
        %v940 = vadd.f32 %v939, 1.0
        %v941 = vrcp.pop %v940
        %v942 = vmul.f32 1.0, %v941
        %v943 = vadd.f32 %v702, %v779
        %v944 = vxor.u32 %v943, 2147483648
        %v945 = vmul.f32 %v944, 1.442695
        %v946 = vpow.pop %v945
        %v947 = vadd.f32 %v946, 1.0
        %v948 = vrcp.pop %v947
        %v949 = vmul.f32 1.0, %v948
        %v950 = vmul.f32 %v942, %v933
        %v951 = vadd.f32 %v856, %v950
        %v952 = vtanh.pop %v951
        %v953 = vsub.f32 1.0, %v949
        %v954 = vmul.f32 %v953, %v952
        %v955 = vmul.f32 %v949, %v470
        %v956 = vadd.f32 %v954, %v955
        %v957 = vld [vmem:[%s6] sm:$0xff]
        %v958 = vld [vmem:[%s6 + $0x8] sm:$0xff]
        %v959 = vld [vmem:[%s6 + $0x10] sm:$0xff]
        %v960 = vld [vmem:[%s6 + $0x18] sm:$0xff]
        %v961 = vld [vmem:[%s7] sm:$0x1]
        %v963 = vsel %vm476, %v956, 0
        %965 = vmatprep.subr.mxu0 0.0
        %966 = vmatpush1.msra.mxu0 %v957
        %967 = vmatprep.subr.mxu0 0.0
        %968 = vmatpush1.msra.mxu0 %v958
        %969 = vmatprep.subr.mxu0 0.0
        %970 = vmatpush1.msra.mxu0 %v959
        %971 = vmatprep.subr.mxu0 0.0
        %972 = vmatpush1.msra.mxu0 %v960
        %973 = vmatprep.subr.mxu0 0.0
        %974 = vmatpush1.msra.mxu0 0.0
        %975 = vmatprep.subr.mxu0 0.0
        %976 = vmatpush1.msra.mxu0 0.0
        %977 = vmatprep.subr.mxu0 0.0
        %978 = vmatpush1.msra.mxu0 0.0
        %979 = vmatprep.subr.mxu0 0.0
        %980 = vmatpush1.msra.mxu0 0.0
        %981 = vmatprep.subr.mxu0 0.0
        %982 = vmatpush1.msra.mxu0 0.0
        %983 = vmatprep.subr.mxu0 0.0
        %984 = vmatpush1.msra.mxu0 0.0
        %985 = vmatprep.subr.mxu0 0.0
        %986 = vmatpush1.msra.mxu0 0.0
        %987 = vmatprep.subr.mxu0 0.0
        %988 = vmatpush1.msra.mxu0 0.0
        %989 = vmatprep.subr.mxu0 0.0
        %990 = vmatpush1.msra.mxu0 0.0
        %991 = vmatprep.subr.mxu0 0.0
        %992 = vmatpush1.msra.mxu0 0.0
        %993 = vmatprep.subr.mxu0 0.0
        %994 = vmatpush1.msra.mxu0 0.0
        %995 = vmatprep.subr.mxu0 0.0
        %996 = vmatpush1.msra.mxu0 0.0
        %997 = vmatprep.subr.mxu0 0.0
        %998 = vmatpush1.msra.mxu0 0.0
        %999 = vmatprep.subr.mxu0 0.0
        %1000 = vmatpush1.msra.mxu0 0.0
        %1001 = vmatprep.subr.mxu0 0.0
        %1002 = vmatpush1.msra.mxu0 0.0
        %1003 = vmatprep.subr.mxu0 0.0
        %1004 = vmatpush1.msra.mxu0 0.0
        %1005 = vmatprep.subr.mxu0 0.0
        %1006 = vmatpush1.msra.mxu0 0.0
        %1007 = vmatprep.subr.mxu0 0.0
        %1008 = vmatpush1.msra.mxu0 0.0
        %1009 = vmatprep.subr.mxu0 0.0
        %1010 = vmatpush1.msra.mxu0 0.0
        %1011 = vmatprep.subr.mxu0 0.0
        %1012 = vmatpush1.msra.mxu0 0.0
        %1013 = vmatprep.subr.mxu0 0.0
        %1014 = vmatpush1.msra.mxu0 0.0
        %1015 = vmatprep.subr.mxu0 0.0
        %1016 = vmatpush1.msra.mxu0 0.0
        %1017 = vmatprep.subr.mxu0 0.0
        %1018 = vmatpush1.msra.mxu0 0.0
        %1019 = vmatprep.subr.mxu0 0.0
        %1020 = vmatpush1.msra.mxu0 0.0
        %1021 = vmatprep.subr.mxu0 0.0
        %1022 = vmatpush1.msra.mxu0 0.0
        %1023 = vmatprep.subr.mxu0 0.0
        %1024 = vmatpush1.msra.mxu0 0.0
        %1025 = vmatprep.subr.mxu0 0.0
        %1026 = vmatpush1.msra.mxu0 0.0
        %1027 = vmatprep.subr.mxu0 0.0
        %1028 = vmatpush1.msra.mxu0 0.0
        %1029 = vmatprep.mubr.f32.mxu0 0.0
        %1030 = vmatmul.mubr.f32.gmra.mrb[0].mxu0 %v963
        %v1031 = vpop.f32.mrb[0].mxu0
        %v1032 = vadd.f32 %v961, %v1031
        %v1033 = vpop.f32.mrb[0].mxu0
        %1034 = vdwg.mxu0
        %vm1035 = vcmask 516096
        %v1036 = vsel %vm1035, %v1032, -inf
        %1037 = vmax.xlane.f32.xlu0 %v1036
        %v1038 = vpop.xlane.xlu0 %1037
        %v1039 = vsub.f32 %v1032, %v1038
        %v1040 = vmul.f32 %v1039, 1.442695
        %v1041 = vpow.pop %v1040
        %v1042 = vsel %vm1035, %v1041, 0.0
        %1043 = vadd.xlane.f32.xlu0 %v1042
        %v1044 = vpop.xlane.xlu0 %1043
        %v1045 = vlog2.pop %v1044
        %v1046 = vmul.f32 %v1045, 0.6931472
        %v1047 = vadd.f32 %v1046, %v1038
        %v1048 = vsub.f32 %v1032, %v1047
        %1049 = vst.msk [vmem:[%s370] sm:$0x1] %vm1035, %v1048
        %vm1050 = vcmask 253952
        %1051 = vst.msk [vmem:[#allocation13] sm:$0x1] %vm1050, %v956
        %s1052 = sand.u32 %s211, 1
        %s1053 = scalar_lea.sflag [#allocation6], %s1052
        %s1054 = sand.u32 %s211, 1
        %s1055 = scalar_lea.vmem [#allocation12], %s1054
        // Predicated region
        $region73: #{decoder_decode.1} parent=51 // pred_check
          %p1056 = pneg %p221
        $region74: #{decoder_decode.1} parent=51 // pred_check_branch
          %1058 = sbr.rel (%p1056) target = $region76
        $region75: #{decoder_decode.1} parent=51 // pred_region
          %s1060 = ssub.s32 16, 16
          %1061 = vsyncadd %s1053, %s1060
          %s1062 = smul.addr %s35, 16
          %s1063 = scalar_lea.hbm %s9, %s1062
          %s1065 = sshll.u32 %s1055, 4
          %s1066 = int_to_ptr.vmem [resolvable:$true] %s1065
          %1068 = dma.vmem_to_hbm [thread:$0]  %s1066, 16, %s1063, %s1053
        $region76: #{decoder_decode.1} parent=51 // pred_fallthru
          _
        // Predicated region
        $region77: #{decoder_decode.1} parent=51 // pred_check
          %p1069 = pneg %p242
        $region78: #{decoder_decode.1} parent=51 // pred_check_branch
          %1071 = sbr.rel (%p1069) target = $region80
        $region79: #{decoder_decode.1} parent=51 // pred_region
          %s1073 = ssub.s32 16, 16
          %1074 = vsyncadd [#allocation14], %s1073
          %s1076 = sshll.u32 [#allocation13], 4
          %s1077 = int_to_ptr.vmem [resolvable:$true] %s1076
          %1079 = dma.vmem_to_hbm [thread:$0]  %s1077, 16, %s10, [#allocation14]
        $region80: #{decoder_decode.1} parent=51 // pred_fallthru
          _
        // Predicated region
        $region81: #{decoder_decode.1} parent=51 // pred_check
          %p1080 = pneg %p242
        $region82: #{decoder_decode.1} parent=51 // pred_check_branch
          %1082 = sbr.rel (%p1080) target = $region84
        $region83: #{decoder_decode.1} parent=51 // pred_region
          %1083 = dma.done [#allocation14], 16
        $region84: #{decoder_decode.1} parent=51 // pred_fallthru
          _
      $region52: #{decoder_decode.1} parent=5 // pred_fallthru
        _
      %p1084 = scmp.le.s32.totalorder 2, %s30
      // Predicated region
      $region85: #{decoder_decode.1} parent=5 // pred_check
        %p1085 = pneg %p1084
      $region86: #{decoder_decode.1} parent=5 // pred_check_branch
        %1087 = sbr.rel (%p1085) target = $region88
      $region87: #{decoder_decode.1} parent=5 // pred_region
        %s1088 = ssub.s32 %s30, 2
        // Predicated region
        $region89: #{decoder_decode.1} parent=87 // pred_check
          %p1089 = pneg %p227
        $region90: #{decoder_decode.1} parent=87 // pred_check_branch
          %1091 = sbr.rel (%p1089) target = $region92
        $region91: #{decoder_decode.1} parent=87 // pred_region
          %s1092 = sand.u32 %s212, 1
          %s1093 = scalar_lea.sflag [#allocation6], %s1092
          %s1094 = sand.u32 %s212, 1
          %s1095 = scalar_lea.vmem [#allocation12], %s1094
          %1096 = dma.done %s1093, 16
        $region92: #{decoder_decode.1} parent=87 // pred_fallthru
          _
      $region88: #{decoder_decode.1} parent=5 // pred_fallthru
        _
    $region6: #{decoder_decode.1} parent=1 // loop_footer
      %s34 = sadd.s32 1, %s30
    $region7: #{decoder_decode.1} parent=1 // loop_footer_branch
      %29 = sbr.rel target = $region3
    $region8: #{decoder_decode.1} parent=1 // loop_exit
      _
    %1097 = vsyncpa [#allocation5], 1
    %s1098 = scalar_lea.sflag [#allocation5], 1
    %1099 = vsyncpa %s1098, 1
    %1100 = vsyncpa [#allocation8], 1
    %1101 = vsyncpa [#allocation11], 1
    %1102 = vsyncpa [#allocation6], 1
    %s1103 = scalar_lea.sflag [#allocation6], 1
    %1104 = vsyncpa %s1103, 1
    %1105 = vsyncpa [#allocation14], 1

</llo_original>
